<compile_context>
chip_gen: v6e
topology: v6e:2x2x1
jax: 0.10.0
libtpu: 0.0.40
codegen_flags: <defaults>
</compile_context>

<pallas_src>
import numpy as np
import jax
import jax.numpy as jnp
from jax.experimental import pallas as pl
from jax.experimental.pallas import tpu as pltpu


# ----------------------------- glue: graph norm -----------------------------
def build_normalized_adjacency(edge_index, num_nodes, improved=False):
    """Replicates GCNConv.norm + (gather * norm -> scatter_add) as a dense
    matrix A_hat with A_hat[col, row] += deg^-1/2[row] * w * deg^-1/2[col]."""
    row = [int(r) for r in edge_index[0]]
    col = [int(c) for c in edge_index[1]]
    w = [1.0] * len(row)

    fill_value = 2.0 if improved else 1.0
    # add_remaining_self_loops: keep non-self-loop edges, add a self loop for
    # every node (existing self-loop weights preserved; none here).
    has_loop_weight = {}
    new_row, new_col, new_w = [], [], []
    for r, c, ww in zip(row, col, w):
        if r == c:
            has_loop_weight[r] = ww
        else:
            new_row.append(r); new_col.append(c); new_w.append(ww)
    for n in range(num_nodes):
        new_row.append(n); new_col.append(n)
        new_w.append(has_loop_weight.get(n, fill_value))
    row, col, w = new_row, new_col, new_w

    deg = np.zeros((num_nodes,), dtype=np.float64)
    for r, ww in zip(row, w):
        deg[r] += ww
    with np.errstate(divide="ignore"):
        deg_inv_sqrt = deg ** -0.5
    deg_inv_sqrt[np.isinf(deg_inv_sqrt)] = 0.0

    a_hat = np.zeros((num_nodes, num_nodes), dtype=np.float32)
    for r, c, ww in zip(row, col, w):
        a_hat[c, r] += deg_inv_sqrt[r] * ww * deg_inv_sqrt[c]
    return a_hat


# ------------------------------- Pallas kernels ------------------------------
def _gcn_layer_relu_kernel(a_ref, x_ref, w_ref, out_ref, acc_ref):
    """One GCN layer: out = relu((A @ X) @ W); K-reduction over grid axis 1."""
    k = pl.program_id(1)

    @pl.when(k == 0)
    def _():
        acc_ref[...] = jnp.zeros_like(acc_ref)

    # acc += A[i, k] @ X[k, :]   (bf16 inputs, f32 accumulation on the MXU)
    acc_ref[...] += jnp.dot(a_ref[...], x_ref[...],
                            preferred_element_type=jnp.float32)

    @pl.when(k == pl.num_programs(1) - 1)
    def _():
        h = jnp.dot(acc_ref[...].astype(jnp.bfloat16), w_ref[...],
                    preferred_element_type=jnp.float32)
        out_ref[...] = jnp.maximum(h, 0.0).astype(out_ref.dtype)


def _make_gcn_layer_logsoftmax_kernel(num_valid_classes):
    """One GCN layer with a masked log_softmax epilogue over padded classes."""

    def kernel(a_ref, x_ref, w_ref, out_ref, acc_ref):
        k = pl.program_id(1)

        @pl.when(k == 0)
        def _():
            acc_ref[...] = jnp.zeros_like(acc_ref)

        acc_ref[...] += jnp.dot(a_ref[...], x_ref[...],
                                preferred_element_type=jnp.float32)

        @pl.when(k == pl.num_programs(1) - 1)
        def _():
            logits = jnp.dot(acc_ref[...].astype(jnp.bfloat16), w_ref[...],
                             preferred_element_type=jnp.float32)
            # Mask padded class lanes so they don't corrupt the normalizer.
            lane = jax.lax.broadcasted_iota(jnp.int32, logits.shape, 1)
            logits = jnp.where(lane < num_valid_classes, logits,
                               jnp.float32(-1e30))
            m = jnp.max(logits, axis=1, keepdims=True)
            z = logits - m
            lse = jnp.log(jnp.sum(jnp.exp(z), axis=1, keepdims=True))
            out_ref[...] = (z - lse).astype(out_ref.dtype)

    return kernel


def _gcn_layer_call(a_p, x_p, w_p, kernel_body, out_dtype, tm, tk):
    """Tiled pallas_call for one GCN layer.

    a_p : (Np, Np)    bf16  normalized adjacency (zero-padded)
    x_p : (Np, Fin)   bf16  node features (zero-padded, lane-dense)
    w_p : (Fin, Fout) bf16  layer weight (zero-padded, lane-dense)
    """
    np_ = a_p.shape[0]
    f_in = x_p.shape[1]
    f_out = w_p.shape[1]
    assert np_ % tm == 0 and np_ % tk == 0
    grid = (np_ // tm, np_ // tk)

    return pl.pallas_call(
        kernel_body,
        out_shape=jax.ShapeDtypeStruct((np_, f_out), out_dtype),
        grid_spec=pltpu.PrefetchScalarGridSpec(
            num_scalar_prefetch=0,
            grid=grid,
            in_specs=[
                pl.BlockSpec((tm, tk), lambda i, k: (i, k)),       # A_hat tile
                pl.BlockSpec((tk, f_in), lambda i, k: (k, 0)),     # X K-slice
                pl.BlockSpec((f_in, f_out), lambda i, k: (0, 0)),  # W (resident)
            ],
            out_specs=pl.BlockSpec((tm, f_out), lambda i, k: (i, 0)),
            scratch_shapes=[pltpu.VMEM((tm, f_in), jnp.float32)],  # A@X accum
        ),
        compiler_params=pltpu.CompilerParams(
            dimension_semantics=("parallel", "arbitrary"),
            vmem_limit_bytes=32 * 1024 * 1024,
        ),
    )(a_p, x_p, w_p)


# ------------------------------ host-side wrapper -----------------------------
def _round_up(v, m):
    return (v + m - 1) // m * m


def _pad_cast(arr, rows, cols, dtype):
    out = jnp.zeros((rows, cols), dtype=dtype)
    return out.at[: arr.shape[0], : arr.shape[1]].set(
        jnp.asarray(arr, dtype=dtype))


def gcn2_forward(x, a_hat, w1, w2, *, tm=256, tk=512):
    """out = log_softmax(A_hat @ (relu(A_hat @ (x @ w1)) @ w2), axis=1)."""
    n, f = x.shape
    h = w1.shape[1]
    c = w2.shape[1]

    # Lane-dense padding of feature/class dims; tile-aligned node dim.
    fp = _round_up(f, 128)
    hp = _round_up(h, 128)
    cp = _round_up(c, 128)
    np_ = _round_up(n, 128)
    tm = min(tm, np_)
    tk = min(tk, np_)
    np_ = _round_up(np_, max(tm, tk))

    a_p = _pad_cast(a_hat, np_, np_, jnp.bfloat16)
    x_p = _pad_cast(x, np_, fp, jnp.bfloat16)
    w1_p = _pad_cast(w1, fp, hp, jnp.bfloat16)
    w2_p = _pad_cast(w2, hp, cp, jnp.bfloat16)

    # Layer 1: GCNConv(F -> H) + relu, bf16 output feeds layer 2 directly.
    h1_p = _gcn_layer_call(a_p, x_p, w1_p, _gcn_layer_relu_kernel,
                           jnp.bfloat16, tm, tk)                  # (Np, Hp)
    # Layer 2: GCNConv(H -> C) + masked log_softmax epilogue.
    out_p = _gcn_layer_call(a_p, h1_p, w2_p,
                            _make_gcn_layer_logsoftmax_kernel(c),
                            jnp.float32, tm, tk)                  # (Np, Cp)
    return out_p[:n, :c]


# ------------------------------ param init (glorot) --------------------------
def glorot(key, shape):
    fan_in, fan_out = shape
    limit = float(np.sqrt(6.0 / (fan_in + fan_out)))
    return jax.random.uniform(key, shape, jnp.float32, -limit, limit)


if __name__ == "__main__":
    # Shapes consistent with the module: num_node_features=16, hidden=512
    # (hardcoded in Net), num_classes=4; 8 nodes, module's edge_index.
    N, F, H, C = 8, 16, 512, 4

    edge_index = np.array(
        [[0, 0, 1, 1, 2, 2, 2, 3],
         [1, 2, 0, 2, 0, 1, 3, 2]], dtype=np.int64)

    key = jax.random.PRNGKey(0)
    kx, kw1, kw2 = jax.random.split(key, 3)

    x = jax.random.normal(kx, (N, F), dtype=jnp.float32)
    w1 = glorot(kw1, (F, H))
    w2 = glorot(kw2, (H, C))
    # Bias params exist in the module (zeros-init) but forward() never adds them.

    a_hat = jnp.asarray(build_normalized_adjacency(edge_index, N), jnp.float32)

    out = gcn2_forward(x, a_hat, w1, w2)
    out = jax.block_until_ready(out)
    assert out.shape == (N, C)

    # Pure-JAX f32 reference of the module's forward pass (kernel runs the MXU
    # in bf16 with f32 accumulation, hence the loosened tolerance).
    h1_ref = jnp.maximum(a_hat @ (x @ w1), 0.0)
    h2_ref = a_hat @ (h1_ref @ w2)
    ref = jax.nn.log_softmax(h2_ref, axis=1)
    np.testing.assert_allclose(np.asarray(out), np.asarray(ref),
                               atol=5e-2, rtol=0)

    print("KERNEL_OK")
</pallas_src>

<mosaic_0001>
module attributes {stable_mosaic.version = 11 : i64} {
  func.func @_gcn_layer_relu_kernel(%arg0: i32, %arg1: i32, %arg2: memref<128x128xbf16, #tpu.memory_space<vmem>>, %arg3: memref<128x128xbf16, #tpu.memory_space<vmem>>, %arg4: memref<128x512xbf16, #tpu.memory_space<vmem>>, %arg5: memref<128x512xbf16, #tpu.memory_space<vmem>>, %arg6: memref<128x128xf32, #tpu.memory_space<vmem>>) attributes {dimension_semantics = [#tpu.dimension_semantics<parallel>, #tpu.dimension_semantics<arbitrary>], iteration_bounds = array<i64: 1, 1>, scalar_prefetch = 0 : i64, scratch_operands = 1 : i64, tpu.core_type = #tpu.core_type<tc>, window_params = [{transform_indices = @transform_0, window_bounds = array<i64: 128, 128>}, {transform_indices = @transform_1, window_bounds = array<i64: 128, 128>}, {pipeline_mode = #tpu.pipeline_mode<synchronous>, transform_indices = @transform_2, window_bounds = array<i64: 128, 512>}, {transform_indices = @transform_3, window_bounds = array<i64: 128, 512>}]} {
    %c0_i32 = arith.constant 0 : i32
    %0 = arith.cmpi eq, %arg1, %c0_i32 : i32
    %1 = arith.extui %0 : i1 to i32
    %c0_i32_0 = arith.constant 0 : i32
    %2 = arith.cmpi ne, %1, %c0_i32_0 : i32
    scf.if %2 {
      %cst_10 = arith.constant 0.000000e+00 : f32
      %12 = vector.broadcast %cst_10 : f32 to vector<128x128xf32>
      %c0_11 = arith.constant 0 : index
      %c0_12 = arith.constant 0 : index
      %13 = vector.load %arg6[%c0_11, %c0_12] : memref<128x128xf32, #tpu.memory_space<vmem>>, vector<128x128xf32>
      tpu.vector_store %arg6[%c0_11, %c0_12], %12 {strides = array<i32>} : memref<128x128xf32, #tpu.memory_space<vmem>>, vector<128x128xf32>,
    } else {
    }
    %c0 = arith.constant 0 : index
    %c0_1 = arith.constant 0 : index
    %3 = vector.load %arg6[%c0, %c0_1] : memref<128x128xf32, #tpu.memory_space<vmem>>, vector<128x128xf32>
    %c0_2 = arith.constant 0 : index
    %c0_3 = arith.constant 0 : index
    %4 = vector.load %arg2[%c0_2, %c0_3] : memref<128x128xbf16, #tpu.memory_space<vmem>>, vector<128x128xbf16>
    %c0_4 = arith.constant 0 : index
    %c0_5 = arith.constant 0 : index
    %5 = vector.load %arg3[%c0_4, %c0_5] : memref<128x128xbf16, #tpu.memory_space<vmem>>, vector<128x128xbf16>
    %cst = arith.constant dense<0.000000e+00> : vector<128x128xf32>
    %6 = tpu.matmul %4, %5, %cst {dimension_numbers = #tpu.dot_dimension_numbers<[1], [0], [0], [1], [0, 0, 1, 1], [], []>} : vector<128x128xbf16>, vector<128x128xbf16>, vector<128x128xf32> -> vector<128x128xf32>
    %7 = arith.addf %3, %6 : vector<128x128xf32>
    %c0_6 = arith.constant 0 : index
    %c0_7 = arith.constant 0 : index
    %8 = vector.load %arg6[%c0_6, %c0_7] : memref<128x128xf32, #tpu.memory_space<vmem>>, vector<128x128xf32>
    tpu.vector_store %arg6[%c0_6, %c0_7], %7 {strides = array<i32>} : memref<128x128xf32, #tpu.memory_space<vmem>>, vector<128x128xf32>,
    %c0_i32_8 = arith.constant 0 : i32
    %9 = arith.cmpi eq, %arg1, %c0_i32_8 : i32
    %10 = arith.extui %9 : i1 to i32
    %c0_i32_9 = arith.constant 0 : i32
    %11 = arith.cmpi ne, %10, %c0_i32_9 : i32
    scf.if %11 {
      %c0_10 = arith.constant 0 : index
      %c0_11 = arith.constant 0 : index
      %12 = vector.load %arg6[%c0_10, %c0_11] : memref<128x128xf32, #tpu.memory_space<vmem>>, vector<128x128xf32>
      %13 = arith.truncf %12 : vector<128x128xf32> to vector<128x128xbf16>
      %c0_12 = arith.constant 0 : index
      %c0_13 = arith.constant 0 : index
      %14 = vector.load %arg4[%c0_12, %c0_13] : memref<128x512xbf16, #tpu.memory_space<vmem>>, vector<128x512xbf16>
      %cst_14 = arith.constant dense<0.000000e+00> : vector<128x512xf32>
      %15 = tpu.matmul %13, %14, %cst_14 {dimension_numbers = #tpu.dot_dimension_numbers<[1], [0], [0], [1], [0, 0, 1, 1], [], []>} : vector<128x128xbf16>, vector<128x512xbf16>, vector<128x512xf32> -> vector<128x512xf32>
      %cst_15 = arith.constant 0.000000e+00 : f32
      %16 = vector.broadcast %cst_15 : f32 to vector<128x512xf32>
      %17 = arith.maximumf %15, %16 : vector<128x512xf32>
      %18 = arith.truncf %17 : vector<128x512xf32> to vector<128x512xbf16>
      %c0_16 = arith.constant 0 : index
      %c0_17 = arith.constant 0 : index
      %19 = vector.load %arg5[%c0_16, %c0_17] : memref<128x512xbf16, #tpu.memory_space<vmem>>, vector<128x512xbf16>
      tpu.vector_store %arg5[%c0_16, %c0_17], %18 {strides = array<i32>} : memref<128x512xbf16, #tpu.memory_space<vmem>>, vector<128x512xbf16>,
    } else {
    }
    return
  }
  func.func @transform_0(%arg0: i32, %arg1: i32) -> (i32, i32) {
    %c0_i32 = arith.constant 0 : i32
    return %arg0, %arg1 : i32, i32
  }
  func.func @transform_1(%arg0: i32, %arg1: i32) -> (i32, i32) {
    %c0_i32 = arith.constant 0 : i32
    %c0_i32_0 = arith.constant 0 : i32
    return %arg1, %c0_i32 : i32, i32
  }
  func.func @transform_2(%arg0: i32, %arg1: i32) -> (i32, i32) {
    %c0_i32 = arith.constant 0 : i32
    %c0_i32_0 = arith.constant 0 : i32
    %c0_i32_1 = arith.constant 0 : i32
    return %c0_i32, %c0_i32_0 : i32, i32
  }
  func.func @transform_3(%arg0: i32, %arg1: i32) -> (i32, i32) {
    %c0_i32 = arith.constant 0 : i32
    %c0_i32_0 = arith.constant 0 : i32
    return %arg0, %c0_i32 : i32, i32
  }
}

</mosaic_0001>

<llo_original>
// kernel: tpu_custom_call.1
$region0: #{tpu_custom_call.1}
  #allocation0 [shape = 'u32[]', space=smem, size = 0x4, offset = 0x4, fixed_abs, tag = 'smem constant byte address 0x4 - core index']
  #allocation1 [shape = 'u32[144,128]{1,0:T(1,128)}', space=vmem, size = 0x12000, scoped, tag = 'internal scratch']
  #allocation2 [shape = 'f32[128,128]{1,0:T(8,128)}', space=vmem, size = 0x10000, scoped, tag = 'scratch operand']
  %s0 = inlined_call_operand.hbm [shape: bf16[128,128], index: 0, kind: input, shape index: {}]
  %s1 = inlined_call_operand.hbm [shape: bf16[128,128], index: 1, kind: input, shape index: {}]
  %s2 = inlined_call_operand.hbm [shape: bf16[128,512], index: 2, kind: input, shape index: {}]
  %s3 = inlined_call_operand.hbm [shape: bf16[128,512], index: 3, kind: output, shape index: {}]
  %s4 = sld [smem:[#allocation0]]
  $region42: #{tpu_custom_call.1} parent=0
    _
  %s6 = ssub.s32 1, %s4
  %s7 = scalar_select 0, %s6, %s4
  $region1: #{tpu_custom_call.1} parent=0
    #allocation3 [shape = 'u8[32768]{0}', space=vmem, size = 0x8000, scoped, tag = 'input window, operand 0, single buffered']
    #allocation4 [shape = 's32[1]{0}', space=sflag, size = 0x4, scoped, tag = 'scoped memory for tpu_custom_call.1']
    #allocation5 [shape = 's32[1]{0}', space=sflag, size = 0x4, scoped, tag = 'scoped memory for tpu_custom_call.1']
    #allocation6 [shape = 'u8[32768]{0}', space=vmem, size = 0x8000, scoped, tag = 'input window, operand 1, single buffered']
    #allocation7 [shape = 's32[1]{0}', space=sflag, size = 0x4, scoped, tag = 'scoped memory for tpu_custom_call.1']
    #allocation8 [shape = 'u8[131072]{0}', space=vmem, size = 0x20000, scoped, tag = 'input window, operand 2, single buffered']
    #allocation9 [shape = 'u8[131072]{0}', space=vmem, size = 0x20000, scoped, tag = 'output window, operand 0, single buffered']
    %8 = vsyncpa [#allocation4], 0
    %9 = vsyncpa [#allocation7], 0
    %10 = vsyncpa [#allocation5], 0
    // Predicated region
    $region2: #{tpu_custom_call.1} parent=1 // pred_check
      _
    $region3: #{tpu_custom_call.1} parent=1 // pred_check_branch
      %12 = sbr.rel (0) target = $region5
    $region4: #{tpu_custom_call.1} parent=1 // pred_region
      %s14 = ssub.s32 1024, 1024
      %15 = vsyncadd [#allocation4], %s14
      %s16 = sshll.u32 [#allocation3], 4
      %s17 = int_to_ptr.vmem [resolvable:$true] %s16
      %22 = dma.hbm_to_vmem [thread:$0]  %s0, 1024, %s17, [#allocation4], 64, 64, 4
    $region5: #{tpu_custom_call.1} parent=1 // pred_fallthru
      _
    // Predicated region
    $region6: #{tpu_custom_call.1} parent=1 // pred_check
      _
    $region7: #{tpu_custom_call.1} parent=1 // pred_check_branch
      %24 = sbr.rel (0) target = $region9
    $region8: #{tpu_custom_call.1} parent=1 // pred_region
      %s26 = ssub.s32 1024, 1024
      %27 = vsyncadd [#allocation7], %s26
      %s28 = sshll.u32 [#allocation6], 4
      %s29 = int_to_ptr.vmem [resolvable:$true] %s28
      %34 = dma.hbm_to_vmem [thread:$0]  %s1, 1024, %s29, [#allocation7], 64, 64, 4
    $region9: #{tpu_custom_call.1} parent=1 // pred_fallthru
      _
    // Predicated region
    $region10: #{tpu_custom_call.1} parent=1 // pred_check
      _
    $region11: #{tpu_custom_call.1} parent=1 // pred_check_branch
      %36 = sbr.rel (0) target = $region13
    $region12: #{tpu_custom_call.1} parent=1 // pred_region
      %s38 = ssub.s32 4096, 4096
      %39 = vsyncadd [#allocation7], %s38
      %s40 = sshll.u32 [#allocation8], 4
      %s41 = int_to_ptr.vmem [resolvable:$true] %s40
      %46 = dma.hbm_to_vmem [thread:$0]  %s2, 4096, %s41, [#allocation7], 256, 256, 16
    $region13: #{tpu_custom_call.1} parent=1 // pred_fallthru
      _
    // Predicated region
    $region14: #{tpu_custom_call.1} parent=1 // pred_check
      _
    $region15: #{tpu_custom_call.1} parent=1 // pred_check_branch
      %48 = sbr.rel (0) target = $region17
    $region16: #{tpu_custom_call.1} parent=1 // pred_region
      %49 = dma.done [#allocation4], 1024
    $region17: #{tpu_custom_call.1} parent=1 // pred_fallthru
      _
    // Predicated region
    $region18: #{tpu_custom_call.1} parent=1 // pred_check
      _
    $region19: #{tpu_custom_call.1} parent=1 // pred_check_branch
      %51 = sbr.rel (0) target = $region21
    $region20: #{tpu_custom_call.1} parent=1 // pred_region
      %52 = dma.done [#allocation7], 1024
    $region21: #{tpu_custom_call.1} parent=1 // pred_fallthru
      _
    // Predicated region
    $region22: #{tpu_custom_call.1} parent=1 // pred_check
      _
    $region23: #{tpu_custom_call.1} parent=1 // pred_check_branch
      %54 = sbr.rel (0) target = $region25
    $region24: #{tpu_custom_call.1} parent=1 // pred_region
      %55 = dma.done [#allocation7], 4096
    $region25: #{tpu_custom_call.1} parent=1 // pred_fallthru
      _
    %p57 = scmp.eq.s32.totalorder 0, 0
    // Predicated region
    $region26: #{tpu_custom_call.1} parent=1 // pred_check
      %p58 = pneg %p57
    $region27: #{tpu_custom_call.1} parent=1 // pred_check_branch
      %60 = sbr.rel (%p58) target = $region29
    $region28: #{tpu_custom_call.1} parent=1 // pred_region
      %61 = vst [vmem:[#allocation2] sm:$0xff] 0.0
      %62 = vst [vmem:[#allocation2 + $0x8] sm:$0xff] 0.0
      %63 = vst [vmem:[#allocation2 + $0x10] sm:$0xff] 0.0
      %64 = vst [vmem:[#allocation2 + $0x18] sm:$0xff] 0.0
      %65 = vst [vmem:[#allocation2 + $0x20] sm:$0xff] 0.0
      %66 = vst [vmem:[#allocation2 + $0x28] sm:$0xff] 0.0
      %67 = vst [vmem:[#allocation2 + $0x30] sm:$0xff] 0.0
      %68 = vst [vmem:[#allocation2 + $0x38] sm:$0xff] 0.0
      %69 = vst [vmem:[#allocation2 + $0x40] sm:$0xff] 0.0
      %70 = vst [vmem:[#allocation2 + $0x48] sm:$0xff] 0.0
      %71 = vst [vmem:[#allocation2 + $0x50] sm:$0xff] 0.0
      %72 = vst [vmem:[#allocation2 + $0x58] sm:$0xff] 0.0
      %73 = vst [vmem:[#allocation2 + $0x60] sm:$0xff] 0.0
      %74 = vst [vmem:[#allocation2 + $0x68] sm:$0xff] 0.0
      %75 = vst [vmem:[#allocation2 + $0x70] sm:$0xff] 0.0
      %76 = vst [vmem:[#allocation2 + $0x78] sm:$0xff] 0.0
    $region29: #{tpu_custom_call.1} parent=1 // pred_fallthru
      _
    %v77 = vld [vmem:[#allocation2] sm:$0xff]
    %v78 = vld [vmem:[#allocation2 + $0x8] sm:$0xff]
    %v79 = vld [vmem:[#allocation2 + $0x10] sm:$0xff]
    %v80 = vld [vmem:[#allocation2 + $0x18] sm:$0xff]
    %v81 = vld [vmem:[#allocation2 + $0x20] sm:$0xff]
    %v82 = vld [vmem:[#allocation2 + $0x28] sm:$0xff]
    %v83 = vld [vmem:[#allocation2 + $0x30] sm:$0xff]
    %v84 = vld [vmem:[#allocation2 + $0x38] sm:$0xff]
    %v85 = vld [vmem:[#allocation2 + $0x40] sm:$0xff]
    %v86 = vld [vmem:[#allocation2 + $0x48] sm:$0xff]
    %v87 = vld [vmem:[#allocation2 + $0x50] sm:$0xff]
    %v88 = vld [vmem:[#allocation2 + $0x58] sm:$0xff]
    %v89 = vld [vmem:[#allocation2 + $0x60] sm:$0xff]
    %v90 = vld [vmem:[#allocation2 + $0x68] sm:$0xff]
    %v91 = vld [vmem:[#allocation2 + $0x70] sm:$0xff]
    %v92 = vld [vmem:[#allocation2 + $0x78] sm:$0xff]
    %v93 = vld [vmem:[#allocation3] sm:$0xf]
    %v94 = vld [vmem:[#allocation3 + $0x4] sm:$0xf]
    %v95 = vld [vmem:[#allocation3 + $0x8] sm:$0xf]
    %v96 = vld [vmem:[#allocation3 + $0xc] sm:$0xf]
    %v97 = vld [vmem:[#allocation3 + $0x10] sm:$0xf]
    %v98 = vld [vmem:[#allocation3 + $0x14] sm:$0xf]
    %v99 = vld [vmem:[#allocation3 + $0x18] sm:$0xf]
    %v100 = vld [vmem:[#allocation3 + $0x1c] sm:$0xf]
    %v101 = vld [vmem:[#allocation3 + $0x20] sm:$0xf]
    %v102 = vld [vmem:[#allocation3 + $0x24] sm:$0xf]
    %v103 = vld [vmem:[#allocation3 + $0x28] sm:$0xf]
    %v104 = vld [vmem:[#allocation3 + $0x2c] sm:$0xf]
    %v105 = vld [vmem:[#allocation3 + $0x30] sm:$0xf]
    %v106 = vld [vmem:[#allocation3 + $0x34] sm:$0xf]
    %v107 = vld [vmem:[#allocation3 + $0x38] sm:$0xf]
    %v108 = vld [vmem:[#allocation3 + $0x3c] sm:$0xf]
    %v109 = vld [vmem:[#allocation6] sm:$0xf]
    %v110 = vld [vmem:[#allocation6 + $0x4] sm:$0xf]
    %v111 = vld [vmem:[#allocation6 + $0x8] sm:$0xf]
    %v112 = vld [vmem:[#allocation6 + $0xc] sm:$0xf]
    %v113 = vld [vmem:[#allocation6 + $0x10] sm:$0xf]
    %v114 = vld [vmem:[#allocation6 + $0x14] sm:$0xf]
    %v115 = vld [vmem:[#allocation6 + $0x18] sm:$0xf]
    %v116 = vld [vmem:[#allocation6 + $0x1c] sm:$0xf]
    %v117 = vld [vmem:[#allocation6 + $0x20] sm:$0xf]
    %v118 = vld [vmem:[#allocation6 + $0x24] sm:$0xf]
    %v119 = vld [vmem:[#allocation6 + $0x28] sm:$0xf]
    %v120 = vld [vmem:[#allocation6 + $0x2c] sm:$0xf]
    %v121 = vld [vmem:[#allocation6 + $0x30] sm:$0xf]
    %v122 = vld [vmem:[#allocation6 + $0x34] sm:$0xf]
    %v123 = vld [vmem:[#allocation6 + $0x38] sm:$0xf]
    %v124 = vld [vmem:[#allocation6 + $0x3c] sm:$0xf]
    %v141 = vunpack.c.l.b16 %v93
    %v142 = vunpack.c.l.b16 %v94
    %v143 = vunpack.c.l.b16 %v95
    %v144 = vunpack.c.l.b16 %v96
    %v145 = vunpack.c.l.b16 %v97
    %v146 = vunpack.c.l.b16 %v98
    %v147 = vunpack.c.l.b16 %v99
    %v148 = vunpack.c.l.b16 %v100
    %v149 = vunpack.c.l.b16 %v101
    %v150 = vunpack.c.l.b16 %v102
    %v151 = vunpack.c.l.b16 %v103
    %v152 = vunpack.c.l.b16 %v104
    %v153 = vunpack.c.l.b16 %v105
    %v154 = vunpack.c.l.b16 %v106
    %v155 = vunpack.c.l.b16 %v107
    %v156 = vunpack.c.l.b16 %v108
    %v157 = vpack.c.b16 %v142, %v141
    %v158 = vpack.c.b16 %v144, %v143
    %v159 = vpack.c.b16 %v146, %v145
    %v160 = vpack.c.b16 %v148, %v147
    %v161 = vpack.c.b16 %v150, %v149
    %v162 = vpack.c.b16 %v152, %v151
    %v163 = vpack.c.b16 %v154, %v153
    %v164 = vpack.c.b16 %v156, %v155
    %v189 = vunpack.c.l.b16 %v109
    %v190 = vunpack.c.l.b16 %v110
    %v191 = vunpack.c.l.b16 %v111
    %v192 = vunpack.c.l.b16 %v112
    %v193 = vunpack.c.l.b16 %v113
    %v194 = vunpack.c.l.b16 %v114
    %v195 = vunpack.c.l.b16 %v115
    %v196 = vunpack.c.l.b16 %v116
    %v197 = vunpack.c.l.b16 %v117
    %v198 = vunpack.c.l.b16 %v118
    %v199 = vunpack.c.l.b16 %v119
    %v200 = vunpack.c.l.b16 %v120
    %v201 = vunpack.c.l.b16 %v121
    %v202 = vunpack.c.l.b16 %v122
    %v203 = vunpack.c.l.b16 %v123
    %v204 = vunpack.c.l.b16 %v124
    %v205 = vpack.c.b16 %v190, %v189
    %v206 = vpack.c.b16 %v192, %v191
    %v207 = vpack.c.b16 %v194, %v193
    %v208 = vpack.c.b16 %v196, %v195
    %v209 = vpack.c.b16 %v198, %v197
    %v210 = vpack.c.b16 %v200, %v199
    %v211 = vpack.c.b16 %v202, %v201
    %v212 = vpack.c.b16 %v204, %v203
    %221 = vmatprep.subr.bf16.mxu0 0
    %222 = vmatpush1.bf16.msra.mxu0 %v212
    %223 = vmatprep.subr.bf16.mxu0 0
    %224 = vmatpush1.bf16.msra.mxu0 %v211
    %225 = vmatprep.subr.bf16.mxu0 0
    %226 = vmatpush1.bf16.msra.mxu0 %v210
    %227 = vmatprep.subr.bf16.mxu0 0
    %228 = vmatpush1.bf16.msra.mxu0 %v209
    %229 = vmatprep.subr.bf16.mxu0 0
    %230 = vmatpush1.bf16.msra.mxu0 %v208
    %231 = vmatprep.subr.bf16.mxu0 0
    %232 = vmatpush1.bf16.msra.mxu0 %v207
    %233 = vmatprep.subr.bf16.mxu0 0
    %234 = vmatpush1.bf16.msra.mxu0 %v206
    %235 = vmatprep.subr.bf16.mxu0 0
    %236 = vmatpush1.bf16.msra.mxu0 %v205
    %237 = vmatprep.subr.bf16.mxu0 0
    %238 = vmatpush2.bf16.msra.mxu0 0
    %239 = vmatprep.subr.bf16.mxu0 0
    %240 = vmatpush2.bf16.msra.mxu0 0
    %241 = vmatprep.subr.bf16.mxu0 0
    %242 = vmatpush2.bf16.msra.mxu0 0
    %243 = vmatprep.subr.bf16.mxu0 0
    %244 = vmatpush2.bf16.msra.mxu0 0
    %245 = vmatprep.subr.bf16.mxu0 0
    %246 = vmatpush2.bf16.msra.mxu0 0
    %247 = vmatprep.subr.bf16.mxu0 0
    %248 = vmatpush2.bf16.msra.mxu0 0
    %249 = vmatprep.subr.bf16.mxu0 0
    %250 = vmatpush2.bf16.msra.mxu0 0
    %251 = vmatprep.subr.bf16.mxu0 0
    %252 = vmatpush2.bf16.msra.mxu0 0
    %253 = vmatprep.mubr.bf16.mxu0 0
    %254 = vmatmul.mubr.bf16.gmra.mxu0 %v157
    %v255 = vpop.f32.mrf.mxu0
    %v256 = vadd.f32 0.0, %v255
    %v257 = vpop.f32.mrf.mxu0
    %v258 = vpop.f32.mrf.mxu0
    %v259 = vadd.f32 0.0, %v258
    %v260 = vpop.f32.mrf.mxu0
    %261 = vmatprep.mubr.bf16.mxu0 0
    %262 = vmatmul.mubr.bf16.gmra.mxu0 %v158
    %v263 = vpop.f32.mrf.mxu0
    %v264 = vadd.f32 0.0, %v263
    %v265 = vpop.f32.mrf.mxu0
    %v266 = vpop.f32.mrf.mxu0
    %v267 = vadd.f32 0.0, %v266
    %v268 = vpop.f32.mrf.mxu0
    %269 = vmatprep.mubr.bf16.mxu0 0
    %270 = vmatmul.mubr.bf16.gmra.mxu0 %v159
    %v271 = vpop.f32.mrf.mxu0
    %v272 = vadd.f32 0.0, %v271
    %v273 = vpop.f32.mrf.mxu0
    %v274 = vpop.f32.mrf.mxu0
    %v275 = vadd.f32 0.0, %v274
    %v276 = vpop.f32.mrf.mxu0
    %277 = vmatprep.mubr.bf16.mxu0 0
    %278 = vmatmul.mubr.bf16.gmra.mxu0 %v160
    %v279 = vpop.f32.mrf.mxu0
    %v280 = vadd.f32 0.0, %v279
    %v281 = vpop.f32.mrf.mxu0
    %v282 = vpop.f32.mrf.mxu0
    %v283 = vadd.f32 0.0, %v282
    %v284 = vpop.f32.mrf.mxu0
    %285 = vmatprep.mubr.bf16.mxu0 0
    %286 = vmatmul.mubr.bf16.gmra.mxu0 %v161
    %v287 = vpop.f32.mrf.mxu0
    %v288 = vadd.f32 0.0, %v287
    %v289 = vpop.f32.mrf.mxu0
    %v290 = vpop.f32.mrf.mxu0
    %v291 = vadd.f32 0.0, %v290
    %v292 = vpop.f32.mrf.mxu0
    %293 = vmatprep.mubr.bf16.mxu0 0
    %294 = vmatmul.mubr.bf16.gmra.mxu0 %v162
    %v295 = vpop.f32.mrf.mxu0
    %v296 = vadd.f32 0.0, %v295
    %v297 = vpop.f32.mrf.mxu0
    %v298 = vpop.f32.mrf.mxu0
    %v299 = vadd.f32 0.0, %v298
    %v300 = vpop.f32.mrf.mxu0
    %301 = vmatprep.mubr.bf16.mxu0 0
    %302 = vmatmul.mubr.bf16.gmra.mxu0 %v163
    %v303 = vpop.f32.mrf.mxu0
    %v304 = vadd.f32 0.0, %v303
    %v305 = vpop.f32.mrf.mxu0
    %v306 = vpop.f32.mrf.mxu0
    %v307 = vadd.f32 0.0, %v306
    %v308 = vpop.f32.mrf.mxu0
    %309 = vmatprep.mubr.bf16.mxu0 0
    %310 = vmatmul.mubr.bf16.gmra.mxu0 %v164
    %v311 = vpop.f32.mrf.mxu0
    %v312 = vadd.f32 0.0, %v311
    %v313 = vpop.f32.mrf.mxu0
    %v314 = vpop.f32.mrf.mxu0
    %v315 = vadd.f32 0.0, %v314
    %v316 = vpop.f32.mrf.mxu0
    %317 = vdwg.mxu0
    %v318 = vadd.f32 %v77, %v256
    %v319 = vadd.f32 %v78, %v259
    %v320 = vadd.f32 %v79, %v264
    %v321 = vadd.f32 %v80, %v267
    %v322 = vadd.f32 %v81, %v272
    %v323 = vadd.f32 %v82, %v275
    %v324 = vadd.f32 %v83, %v280
    %v325 = vadd.f32 %v84, %v283
    %v326 = vadd.f32 %v85, %v288
    %v327 = vadd.f32 %v86, %v291
    %v328 = vadd.f32 %v87, %v296
    %v329 = vadd.f32 %v88, %v299
    %v330 = vadd.f32 %v89, %v304
    %v331 = vadd.f32 %v90, %v307
    %v332 = vadd.f32 %v91, %v312
    %v333 = vadd.f32 %v92, %v315
    %334 = vst [vmem:[#allocation2] sm:$0xff] %v318
    %335 = vst [vmem:[#allocation2 + $0x8] sm:$0xff] %v319
    %336 = vst [vmem:[#allocation2 + $0x10] sm:$0xff] %v320
    %337 = vst [vmem:[#allocation2 + $0x18] sm:$0xff] %v321
    %338 = vst [vmem:[#allocation2 + $0x20] sm:$0xff] %v322
    %339 = vst [vmem:[#allocation2 + $0x28] sm:$0xff] %v323
    %340 = vst [vmem:[#allocation2 + $0x30] sm:$0xff] %v324
    %341 = vst [vmem:[#allocation2 + $0x38] sm:$0xff] %v325
    %342 = vst [vmem:[#allocation2 + $0x40] sm:$0xff] %v326
    %343 = vst [vmem:[#allocation2 + $0x48] sm:$0xff] %v327
    %344 = vst [vmem:[#allocation2 + $0x50] sm:$0xff] %v328
    %345 = vst [vmem:[#allocation2 + $0x58] sm:$0xff] %v329
    %346 = vst [vmem:[#allocation2 + $0x60] sm:$0xff] %v330
    %347 = vst [vmem:[#allocation2 + $0x68] sm:$0xff] %v331
    %348 = vst [vmem:[#allocation2 + $0x70] sm:$0xff] %v332
    %349 = vst [vmem:[#allocation2 + $0x78] sm:$0xff] %v333
    // Predicated region
    $region30: #{tpu_custom_call.1} parent=1 // pred_check
      %p350 = pneg %p57
    $region31: #{tpu_custom_call.1} parent=1 // pred_check_branch
      %352 = sbr.rel (%p350) target = $region33
    $region32: #{tpu_custom_call.1} parent=1 // pred_region
      %v353 = vld [vmem:[#allocation2] sm:$0xff]
      %v354 = vld [vmem:[#allocation2 + $0x8] sm:$0xff]
      %v355 = vld [vmem:[#allocation2 + $0x10] sm:$0xff]
      %v356 = vld [vmem:[#allocation2 + $0x18] sm:$0xff]
      %v357 = vld [vmem:[#allocation2 + $0x20] sm:$0xff]
      %v358 = vld [vmem:[#allocation2 + $0x28] sm:$0xff]
      %v359 = vld [vmem:[#allocation2 + $0x30] sm:$0xff]
      %v360 = vld [vmem:[#allocation2 + $0x38] sm:$0xff]
      %v361 = vld [vmem:[#allocation2 + $0x40] sm:$0xff]
      %v362 = vld [vmem:[#allocation2 + $0x48] sm:$0xff]
      %v363 = vld [vmem:[#allocation2 + $0x50] sm:$0xff]
      %v364 = vld [vmem:[#allocation2 + $0x58] sm:$0xff]
      %v365 = vld [vmem:[#allocation2 + $0x60] sm:$0xff]
      %v366 = vld [vmem:[#allocation2 + $0x68] sm:$0xff]
      %v367 = vld [vmem:[#allocation2 + $0x70] sm:$0xff]
      %v368 = vld [vmem:[#allocation2 + $0x78] sm:$0xff]
      %v369 = vpack.c.bf16 %v354, %v353
      %v370 = vpack.c.bf16 %v356, %v355
      %v371 = vpack.c.bf16 %v358, %v357
      %v372 = vpack.c.bf16 %v360, %v359
      %v373 = vpack.c.bf16 %v362, %v361
      %v374 = vpack.c.bf16 %v364, %v363
      %v375 = vpack.c.bf16 %v366, %v365
      %v376 = vpack.c.bf16 %v368, %v367
      %v377 = vld [vmem:[#allocation8] sm:$0xff]
      %v378 = vld [vmem:[#allocation8 + $0x8] sm:$0xff]
      %v379 = vld [vmem:[#allocation8 + $0x10] sm:$0xff]
      %v380 = vld [vmem:[#allocation8 + $0x18] sm:$0xff]
      %v381 = vld [vmem:[#allocation8 + $0x20] sm:$0xff]
      %v382 = vld [vmem:[#allocation8 + $0x28] sm:$0xff]
      %v383 = vld [vmem:[#allocation8 + $0x30] sm:$0xff]
      %v384 = vld [vmem:[#allocation8 + $0x38] sm:$0xff]
      %v385 = vld [vmem:[#allocation8 + $0x40] sm:$0xff]
      %v386 = vld [vmem:[#allocation8 + $0x48] sm:$0xff]
      %v387 = vld [vmem:[#allocation8 + $0x50] sm:$0xff]
      %v388 = vld [vmem:[#allocation8 + $0x58] sm:$0xff]
      %v389 = vld [vmem:[#allocation8 + $0x60] sm:$0xff]
      %v390 = vld [vmem:[#allocation8 + $0x68] sm:$0xff]
      %v391 = vld [vmem:[#allocation8 + $0x70] sm:$0xff]
      %v392 = vld [vmem:[#allocation8 + $0x78] sm:$0xff]
      %v393 = vld [vmem:[#allocation8 + $0x80] sm:$0xff]
      %v394 = vld [vmem:[#allocation8 + $0x88] sm:$0xff]
      %v395 = vld [vmem:[#allocation8 + $0x90] sm:$0xff]
      %v396 = vld [vmem:[#allocation8 + $0x98] sm:$0xff]
      %v397 = vld [vmem:[#allocation8 + $0xa0] sm:$0xff]
      %v398 = vld [vmem:[#allocation8 + $0xa8] sm:$0xff]
      %v399 = vld [vmem:[#allocation8 + $0xb0] sm:$0xff]
      %v400 = vld [vmem:[#allocation8 + $0xb8] sm:$0xff]
      %v401 = vld [vmem:[#allocation8 + $0xc0] sm:$0xff]
      %v402 = vld [vmem:[#allocation8 + $0xc8] sm:$0xff]
      %v403 = vld [vmem:[#allocation8 + $0xd0] sm:$0xff]
      %v404 = vld [vmem:[#allocation8 + $0xd8] sm:$0xff]
      %v405 = vld [vmem:[#allocation8 + $0xe0] sm:$0xff]
      %v406 = vld [vmem:[#allocation8 + $0xe8] sm:$0xff]
      %v407 = vld [vmem:[#allocation8 + $0xf0] sm:$0xff]
      %v408 = vld [vmem:[#allocation8 + $0xf8] sm:$0xff]
      %v441 = vunpack.c.l.b16 %v377
      %v442 = vunpack.c.h.b16 %v377
      %v443 = vunpack.c.l.b16 %v378
      %v444 = vunpack.c.h.b16 %v378
      %v445 = vunpack.c.l.b16 %v379
      %v446 = vunpack.c.h.b16 %v379
      %v447 = vunpack.c.l.b16 %v380
      %v448 = vunpack.c.h.b16 %v380
      %v449 = vunpack.c.l.b16 %v381
      %v450 = vunpack.c.h.b16 %v381
      %v451 = vunpack.c.l.b16 %v382
      %v452 = vunpack.c.h.b16 %v382
      %v453 = vunpack.c.l.b16 %v383
      %v454 = vunpack.c.h.b16 %v383
      %v455 = vunpack.c.l.b16 %v384
      %v456 = vunpack.c.h.b16 %v384
      %v457 = vunpack.c.l.b16 %v385
      %v458 = vunpack.c.h.b16 %v385
      %v459 = vunpack.c.l.b16 %v386
      %v460 = vunpack.c.h.b16 %v386
      %v461 = vunpack.c.l.b16 %v387
      %v462 = vunpack.c.h.b16 %v387
      %v463 = vunpack.c.l.b16 %v388
      %v464 = vunpack.c.h.b16 %v388
      %v465 = vunpack.c.l.b16 %v389
      %v466 = vunpack.c.h.b16 %v389
      %v467 = vunpack.c.l.b16 %v390
      %v468 = vunpack.c.h.b16 %v390
      %v469 = vunpack.c.l.b16 %v391
      %v470 = vunpack.c.h.b16 %v391
      %v471 = vunpack.c.l.b16 %v392
      %v472 = vunpack.c.h.b16 %v392
      %v473 = vunpack.c.l.b16 %v393
      %v474 = vunpack.c.h.b16 %v393
      %v475 = vunpack.c.l.b16 %v394
      %v476 = vunpack.c.h.b16 %v394
      %v477 = vunpack.c.l.b16 %v395
      %v478 = vunpack.c.h.b16 %v395
      %v479 = vunpack.c.l.b16 %v396
      %v480 = vunpack.c.h.b16 %v396
      %v481 = vunpack.c.l.b16 %v397
      %v482 = vunpack.c.h.b16 %v397
      %v483 = vunpack.c.l.b16 %v398
      %v484 = vunpack.c.h.b16 %v398
      %v485 = vunpack.c.l.b16 %v399
      %v486 = vunpack.c.h.b16 %v399
      %v487 = vunpack.c.l.b16 %v400
      %v488 = vunpack.c.h.b16 %v400
      %v489 = vunpack.c.l.b16 %v401
      %v490 = vunpack.c.h.b16 %v401
      %v491 = vunpack.c.l.b16 %v402
      %v492 = vunpack.c.h.b16 %v402
      %v493 = vunpack.c.l.b16 %v403
      %v494 = vunpack.c.h.b16 %v403
      %v495 = vunpack.c.l.b16 %v404
      %v496 = vunpack.c.h.b16 %v404
      %v497 = vunpack.c.l.b16 %v405
      %v498 = vunpack.c.h.b16 %v405
      %v499 = vunpack.c.l.b16 %v406
      %v500 = vunpack.c.h.b16 %v406
      %v501 = vunpack.c.l.b16 %v407
      %v502 = vunpack.c.h.b16 %v407
      %v503 = vunpack.c.l.b16 %v408
      %v504 = vunpack.c.h.b16 %v408
      %v505 = vpack.c.b16 %v445, %v441
      %v506 = vpack.c.b16 %v446, %v442
      %v507 = vpack.c.b16 %v447, %v443
      %v508 = vpack.c.b16 %v448, %v444
      %v509 = vpack.c.b16 %v453, %v449
      %v510 = vpack.c.b16 %v454, %v450
      %v511 = vpack.c.b16 %v455, %v451
      %v512 = vpack.c.b16 %v456, %v452
      %v513 = vpack.c.b16 %v461, %v457
      %v514 = vpack.c.b16 %v462, %v458
      %v515 = vpack.c.b16 %v463, %v459
      %v516 = vpack.c.b16 %v464, %v460
      %v517 = vpack.c.b16 %v469, %v465
      %v518 = vpack.c.b16 %v470, %v466
      %v519 = vpack.c.b16 %v471, %v467
      %v520 = vpack.c.b16 %v472, %v468
      %v521 = vpack.c.b16 %v477, %v473
      %v522 = vpack.c.b16 %v478, %v474
      %v523 = vpack.c.b16 %v479, %v475
      %v524 = vpack.c.b16 %v480, %v476
      %v525 = vpack.c.b16 %v485, %v481
      %v526 = vpack.c.b16 %v486, %v482
      %v527 = vpack.c.b16 %v487, %v483
      %v528 = vpack.c.b16 %v488, %v484
      %v529 = vpack.c.b16 %v493, %v489
      %v530 = vpack.c.b16 %v494, %v490
      %v531 = vpack.c.b16 %v495, %v491
      %v532 = vpack.c.b16 %v496, %v492
      %v533 = vpack.c.b16 %v501, %v497
      %v534 = vpack.c.b16 %v502, %v498
      %v535 = vpack.c.b16 %v503, %v499
      %v536 = vpack.c.b16 %v504, %v500
      %569 = vmatprep.subr.bf16.mxu0 %v534
      %570 = vmatpush1.bf16.msra.mxu0 %v533
      %571 = vmatprep.subr.bf16.mxu0 %v530
      %572 = vmatpush1.bf16.msra.mxu0 %v529
      %573 = vmatprep.subr.bf16.mxu0 %v526
      %574 = vmatpush1.bf16.msra.mxu0 %v525
      %575 = vmatprep.subr.bf16.mxu0 %v522
      %576 = vmatpush1.bf16.msra.mxu0 %v521
      %577 = vmatprep.subr.bf16.mxu0 %v518
      %578 = vmatpush1.bf16.msra.mxu0 %v517
      %579 = vmatprep.subr.bf16.mxu0 %v514
      %580 = vmatpush1.bf16.msra.mxu0 %v513
      %581 = vmatprep.subr.bf16.mxu0 %v510
      %582 = vmatpush1.bf16.msra.mxu0 %v509
      %583 = vmatprep.subr.bf16.mxu0 %v506
      %584 = vmatpush1.bf16.msra.mxu0 %v505
      %585 = vmatprep.subr.bf16.mxu0 0
      %586 = vmatpush2.bf16.msra.mxu0 0
      %587 = vmatprep.subr.bf16.mxu0 0
      %588 = vmatpush2.bf16.msra.mxu0 0
      %589 = vmatprep.subr.bf16.mxu0 0
      %590 = vmatpush2.bf16.msra.mxu0 0
      %591 = vmatprep.subr.bf16.mxu0 0
      %592 = vmatpush2.bf16.msra.mxu0 0
      %593 = vmatprep.subr.bf16.mxu0 0
      %594 = vmatpush2.bf16.msra.mxu0 0
      %595 = vmatprep.subr.bf16.mxu0 0
      %596 = vmatpush2.bf16.msra.mxu0 0
      %597 = vmatprep.subr.bf16.mxu0 0
      %598 = vmatpush2.bf16.msra.mxu0 0
      %599 = vmatprep.subr.bf16.mxu0 0
      %600 = vmatpush2.bf16.msra.mxu0 0
      %601 = vmatprep.mubr.bf16.mxu0 0
      %602 = vmatmul.mubr.bf16.gmra.mxu0 %v369
      %v603 = vpop.f32.mrf.mxu0
      %v604 = vadd.f32 0.0, %v603
      %v605 = vpop.f32.mrf.mxu0
      %v606 = vadd.f32 0.0, %v605
      %v607 = vpop.f32.mrf.mxu0
      %v608 = vadd.f32 0.0, %v607
      %v609 = vpop.f32.mrf.mxu0
      %v610 = vadd.f32 0.0, %v609
      %611 = vmatprep.mubr.bf16.mxu0 0
      %612 = vmatmul.mubr.bf16.gmra.mxu0 %v370
      %v613 = vpop.f32.mrf.mxu0
      %v614 = vadd.f32 0.0, %v613
      %v615 = vpop.f32.mrf.mxu0
      %v616 = vadd.f32 0.0, %v615
      %v617 = vpop.f32.mrf.mxu0
      %v618 = vadd.f32 0.0, %v617
      %v619 = vpop.f32.mrf.mxu0
      %v620 = vadd.f32 0.0, %v619
      %621 = vmatprep.mubr.bf16.mxu0 0
      %622 = vmatmul.mubr.bf16.gmra.mxu0 %v371
      %v623 = vpop.f32.mrf.mxu0
      %v624 = vadd.f32 0.0, %v623
      %v625 = vpop.f32.mrf.mxu0
      %v626 = vadd.f32 0.0, %v625
      %v627 = vpop.f32.mrf.mxu0
      %v628 = vadd.f32 0.0, %v627
      %v629 = vpop.f32.mrf.mxu0
      %v630 = vadd.f32 0.0, %v629
      %631 = vmatprep.mubr.bf16.mxu0 0
      %632 = vmatmul.mubr.bf16.gmra.mxu0 %v372
      %v633 = vpop.f32.mrf.mxu0
      %v634 = vadd.f32 0.0, %v633
      %v635 = vpop.f32.mrf.mxu0
      %v636 = vadd.f32 0.0, %v635
      %v637 = vpop.f32.mrf.mxu0
      %v638 = vadd.f32 0.0, %v637
      %v639 = vpop.f32.mrf.mxu0
      %v640 = vadd.f32 0.0, %v639
      %641 = vmatprep.mubr.bf16.mxu0 0
      %642 = vmatmul.mubr.bf16.gmra.mxu0 %v373
      %v643 = vpop.f32.mrf.mxu0
      %v644 = vadd.f32 0.0, %v643
      %v645 = vpop.f32.mrf.mxu0
      %v646 = vadd.f32 0.0, %v645
      %v647 = vpop.f32.mrf.mxu0
      %v648 = vadd.f32 0.0, %v647
      %v649 = vpop.f32.mrf.mxu0
      %v650 = vadd.f32 0.0, %v649
      %651 = vmatprep.mubr.bf16.mxu0 0
      %652 = vmatmul.mubr.bf16.gmra.mxu0 %v374
      %v653 = vpop.f32.mrf.mxu0
      %v654 = vadd.f32 0.0, %v653
      %v655 = vpop.f32.mrf.mxu0
      %v656 = vadd.f32 0.0, %v655
      %v657 = vpop.f32.mrf.mxu0
      %v658 = vadd.f32 0.0, %v657
      %v659 = vpop.f32.mrf.mxu0
      %v660 = vadd.f32 0.0, %v659
      %661 = vmatprep.mubr.bf16.mxu0 0
      %662 = vmatmul.mubr.bf16.gmra.mxu0 %v375
      %v663 = vpop.f32.mrf.mxu0
      %v664 = vadd.f32 0.0, %v663
      %v665 = vpop.f32.mrf.mxu0
      %v666 = vadd.f32 0.0, %v665
      %v667 = vpop.f32.mrf.mxu0
      %v668 = vadd.f32 0.0, %v667
      %v669 = vpop.f32.mrf.mxu0
      %v670 = vadd.f32 0.0, %v669
      %671 = vmatprep.mubr.bf16.mxu0 0
      %672 = vmatmul.mubr.bf16.gmra.mxu0 %v376
      %v673 = vpop.f32.mrf.mxu0
      %v674 = vadd.f32 0.0, %v673
      %v675 = vpop.f32.mrf.mxu0
      %v676 = vadd.f32 0.0, %v675
      %v677 = vpop.f32.mrf.mxu0
      %v678 = vadd.f32 0.0, %v677
      %v679 = vpop.f32.mrf.mxu0
      %v680 = vadd.f32 0.0, %v679
      %681 = vdwg.mxu0
      %682 = vmatprep.subr.bf16.mxu0 %v536
      %683 = vmatpush1.bf16.msra.mxu0 %v535
      %684 = vmatprep.subr.bf16.mxu0 %v532
      %685 = vmatpush1.bf16.msra.mxu0 %v531
      %686 = vmatprep.subr.bf16.mxu0 %v528
      %687 = vmatpush1.bf16.msra.mxu0 %v527
      %688 = vmatprep.subr.bf16.mxu0 %v524
      %689 = vmatpush1.bf16.msra.mxu0 %v523
      %690 = vmatprep.subr.bf16.mxu0 %v520
      %691 = vmatpush1.bf16.msra.mxu0 %v519
      %692 = vmatprep.subr.bf16.mxu0 %v516
      %693 = vmatpush1.bf16.msra.mxu0 %v515
      %694 = vmatprep.subr.bf16.mxu0 %v512
      %695 = vmatpush1.bf16.msra.mxu0 %v511
      %696 = vmatprep.subr.bf16.mxu0 %v508
      %697 = vmatpush1.bf16.msra.mxu0 %v507
      %698 = vmatprep.subr.bf16.mxu0 0
      %699 = vmatpush2.bf16.msra.mxu0 0
      %700 = vmatprep.subr.bf16.mxu0 0
      %701 = vmatpush2.bf16.msra.mxu0 0
      %702 = vmatprep.subr.bf16.mxu0 0
      %703 = vmatpush2.bf16.msra.mxu0 0
      %704 = vmatprep.subr.bf16.mxu0 0
      %705 = vmatpush2.bf16.msra.mxu0 0
      %706 = vmatprep.subr.bf16.mxu0 0
      %707 = vmatpush2.bf16.msra.mxu0 0
      %708 = vmatprep.subr.bf16.mxu0 0
      %709 = vmatpush2.bf16.msra.mxu0 0
      %710 = vmatprep.subr.bf16.mxu0 0
      %711 = vmatpush2.bf16.msra.mxu0 0
      %712 = vmatprep.subr.bf16.mxu0 0
      %713 = vmatpush2.bf16.msra.mxu0 0
      %714 = vmatprep.mubr.bf16.mxu0 0
      %715 = vmatmul.mubr.bf16.gmra.mxu0 %v369
      %v716 = vpop.f32.mrf.mxu0
      %v717 = vadd.f32 0.0, %v716
      %v718 = vpop.f32.mrf.mxu0
      %v719 = vadd.f32 0.0, %v718
      %v720 = vpop.f32.mrf.mxu0
      %v721 = vadd.f32 0.0, %v720
      %v722 = vpop.f32.mrf.mxu0
      %v723 = vadd.f32 0.0, %v722
      %724 = vmatprep.mubr.bf16.mxu0 0
      %725 = vmatmul.mubr.bf16.gmra.mxu0 %v370
      %v726 = vpop.f32.mrf.mxu0
      %v727 = vadd.f32 0.0, %v726
      %v728 = vpop.f32.mrf.mxu0
      %v729 = vadd.f32 0.0, %v728
      %v730 = vpop.f32.mrf.mxu0
      %v731 = vadd.f32 0.0, %v730
      %v732 = vpop.f32.mrf.mxu0
      %v733 = vadd.f32 0.0, %v732
      %734 = vmatprep.mubr.bf16.mxu0 0
      %735 = vmatmul.mubr.bf16.gmra.mxu0 %v371
      %v736 = vpop.f32.mrf.mxu0
      %v737 = vadd.f32 0.0, %v736
      %v738 = vpop.f32.mrf.mxu0
      %v739 = vadd.f32 0.0, %v738
      %v740 = vpop.f32.mrf.mxu0
      %v741 = vadd.f32 0.0, %v740
      %v742 = vpop.f32.mrf.mxu0
      %v743 = vadd.f32 0.0, %v742
      %744 = vmatprep.mubr.bf16.mxu0 0
      %745 = vmatmul.mubr.bf16.gmra.mxu0 %v372
      %v746 = vpop.f32.mrf.mxu0
      %v747 = vadd.f32 0.0, %v746
      %v748 = vpop.f32.mrf.mxu0
      %v749 = vadd.f32 0.0, %v748
      %v750 = vpop.f32.mrf.mxu0
      %v751 = vadd.f32 0.0, %v750
      %v752 = vpop.f32.mrf.mxu0
      %v753 = vadd.f32 0.0, %v752
      %754 = vmatprep.mubr.bf16.mxu0 0
      %755 = vmatmul.mubr.bf16.gmra.mxu0 %v373
      %v756 = vpop.f32.mrf.mxu0
      %v757 = vadd.f32 0.0, %v756
      %v758 = vpop.f32.mrf.mxu0
      %v759 = vadd.f32 0.0, %v758
      %v760 = vpop.f32.mrf.mxu0
      %v761 = vadd.f32 0.0, %v760
      %v762 = vpop.f32.mrf.mxu0
      %v763 = vadd.f32 0.0, %v762
      %764 = vmatprep.mubr.bf16.mxu0 0
      %765 = vmatmul.mubr.bf16.gmra.mxu0 %v374
      %v766 = vpop.f32.mrf.mxu0
      %v767 = vadd.f32 0.0, %v766
      %v768 = vpop.f32.mrf.mxu0
      %v769 = vadd.f32 0.0, %v768
      %v770 = vpop.f32.mrf.mxu0
      %v771 = vadd.f32 0.0, %v770
      %v772 = vpop.f32.mrf.mxu0
      %v773 = vadd.f32 0.0, %v772
      %774 = vmatprep.mubr.bf16.mxu0 0
      %775 = vmatmul.mubr.bf16.gmra.mxu0 %v375
      %v776 = vpop.f32.mrf.mxu0
      %v777 = vadd.f32 0.0, %v776
      %v778 = vpop.f32.mrf.mxu0
      %v779 = vadd.f32 0.0, %v778
      %v780 = vpop.f32.mrf.mxu0
      %v781 = vadd.f32 0.0, %v780
      %v782 = vpop.f32.mrf.mxu0
      %v783 = vadd.f32 0.0, %v782
      %784 = vmatprep.mubr.bf16.mxu0 0
      %785 = vmatmul.mubr.bf16.gmra.mxu0 %v376
      %v786 = vpop.f32.mrf.mxu0
      %v787 = vadd.f32 0.0, %v786
      %v788 = vpop.f32.mrf.mxu0
      %v789 = vadd.f32 0.0, %v788
      %v790 = vpop.f32.mrf.mxu0
      %v791 = vadd.f32 0.0, %v790
      %v792 = vpop.f32.mrf.mxu0
      %v793 = vadd.f32 0.0, %v792
      %794 = vdwg.mxu0
      %v795 = vmax.f32 %v604, 0.0
      %v796 = vmax.f32 %v606, 0.0
      %v797 = vmax.f32 %v717, 0.0
      %v798 = vmax.f32 %v719, 0.0
      %v799 = vmax.f32 %v608, 0.0
      %v800 = vmax.f32 %v610, 0.0
      %v801 = vmax.f32 %v721, 0.0
      %v802 = vmax.f32 %v723, 0.0
      %v803 = vmax.f32 %v614, 0.0
      %v804 = vmax.f32 %v616, 0.0
      %v805 = vmax.f32 %v727, 0.0
      %v806 = vmax.f32 %v729, 0.0
      %v807 = vmax.f32 %v618, 0.0
      %v808 = vmax.f32 %v620, 0.0
      %v809 = vmax.f32 %v731, 0.0
      %v810 = vmax.f32 %v733, 0.0
      %v811 = vmax.f32 %v624, 0.0
      %v812 = vmax.f32 %v626, 0.0
      %v813 = vmax.f32 %v737, 0.0
      %v814 = vmax.f32 %v739, 0.0
      %v815 = vmax.f32 %v628, 0.0
      %v816 = vmax.f32 %v630, 0.0
      %v817 = vmax.f32 %v741, 0.0
      %v818 = vmax.f32 %v743, 0.0
      %v819 = vmax.f32 %v634, 0.0
      %v820 = vmax.f32 %v636, 0.0
      %v821 = vmax.f32 %v747, 0.0
      %v822 = vmax.f32 %v749, 0.0
      %v823 = vmax.f32 %v638, 0.0
      %v824 = vmax.f32 %v640, 0.0
      %v825 = vmax.f32 %v751, 0.0
      %v826 = vmax.f32 %v753, 0.0
      %v827 = vmax.f32 %v644, 0.0
      %v828 = vmax.f32 %v646, 0.0
      %v829 = vmax.f32 %v757, 0.0
      %v830 = vmax.f32 %v759, 0.0
      %v831 = vmax.f32 %v648, 0.0
      %v832 = vmax.f32 %v650, 0.0
      %v833 = vmax.f32 %v761, 0.0
      %v834 = vmax.f32 %v763, 0.0
      %v835 = vmax.f32 %v654, 0.0
      %v836 = vmax.f32 %v656, 0.0
      %v837 = vmax.f32 %v767, 0.0
      %v838 = vmax.f32 %v769, 0.0
      %v839 = vmax.f32 %v658, 0.0
      %v840 = vmax.f32 %v660, 0.0
      %v841 = vmax.f32 %v771, 0.0
      %v842 = vmax.f32 %v773, 0.0
      %v843 = vmax.f32 %v664, 0.0
      %v844 = vmax.f32 %v666, 0.0
      %v845 = vmax.f32 %v777, 0.0
      %v846 = vmax.f32 %v779, 0.0
      %v847 = vmax.f32 %v668, 0.0
      %v848 = vmax.f32 %v670, 0.0
      %v849 = vmax.f32 %v781, 0.0
      %v850 = vmax.f32 %v783, 0.0
      %v851 = vmax.f32 %v674, 0.0
      %v852 = vmax.f32 %v676, 0.0
      %v853 = vmax.f32 %v787, 0.0
      %v854 = vmax.f32 %v789, 0.0
      %v855 = vmax.f32 %v678, 0.0
      %v856 = vmax.f32 %v680, 0.0
      %v857 = vmax.f32 %v791, 0.0
      %v858 = vmax.f32 %v793, 0.0
      %v859 = vpack.c.bf16 %v799, %v795
      %v860 = vpack.c.bf16 %v800, %v796
      %v861 = vpack.c.bf16 %v801, %v797
      %v862 = vpack.c.bf16 %v802, %v798
      %v863 = vpack.c.bf16 %v807, %v803
      %v864 = vpack.c.bf16 %v808, %v804
      %v865 = vpack.c.bf16 %v809, %v805
      %v866 = vpack.c.bf16 %v810, %v806
      %v867 = vpack.c.bf16 %v815, %v811
      %v868 = vpack.c.bf16 %v816, %v812
      %v869 = vpack.c.bf16 %v817, %v813
      %v870 = vpack.c.bf16 %v818, %v814
      %v871 = vpack.c.bf16 %v823, %v819
      %v872 = vpack.c.bf16 %v824, %v820
      %v873 = vpack.c.bf16 %v825, %v821
      %v874 = vpack.c.bf16 %v826, %v822
      %v875 = vpack.c.bf16 %v831, %v827
      %v876 = vpack.c.bf16 %v832, %v828
      %v877 = vpack.c.bf16 %v833, %v829
      %v878 = vpack.c.bf16 %v834, %v830
      %v879 = vpack.c.bf16 %v839, %v835
      %v880 = vpack.c.bf16 %v840, %v836
      %v881 = vpack.c.bf16 %v841, %v837
      %v882 = vpack.c.bf16 %v842, %v838
      %v883 = vpack.c.bf16 %v847, %v843
      %v884 = vpack.c.bf16 %v848, %v844
      %v885 = vpack.c.bf16 %v849, %v845
      %v886 = vpack.c.bf16 %v850, %v846
      %v887 = vpack.c.bf16 %v855, %v851
      %v888 = vpack.c.bf16 %v856, %v852
      %v889 = vpack.c.bf16 %v857, %v853
      %v890 = vpack.c.bf16 %v858, %v854
      %v923 = vunpack.c.l.b16 %v859
      %v924 = vunpack.c.l.b16 %v860
      %v925 = vunpack.c.l.b16 %v861
      %v926 = vunpack.c.l.b16 %v862
      %v927 = vunpack.c.h.b16 %v859
      %v928 = vunpack.c.h.b16 %v860
      %v929 = vunpack.c.h.b16 %v861
      %v930 = vunpack.c.h.b16 %v862
      %v931 = vunpack.c.l.b16 %v863
      %v932 = vunpack.c.l.b16 %v864
      %v933 = vunpack.c.l.b16 %v865
      %v934 = vunpack.c.l.b16 %v866
      %v935 = vunpack.c.h.b16 %v863
      %v936 = vunpack.c.h.b16 %v864
      %v937 = vunpack.c.h.b16 %v865
      %v938 = vunpack.c.h.b16 %v866
      %v939 = vunpack.c.l.b16 %v867
      %v940 = vunpack.c.l.b16 %v868
      %v941 = vunpack.c.l.b16 %v869
      %v942 = vunpack.c.l.b16 %v870
      %v943 = vunpack.c.h.b16 %v867
      %v944 = vunpack.c.h.b16 %v868
      %v945 = vunpack.c.h.b16 %v869
      %v946 = vunpack.c.h.b16 %v870
      %v947 = vunpack.c.l.b16 %v871
      %v948 = vunpack.c.l.b16 %v872
      %v949 = vunpack.c.l.b16 %v873
      %v950 = vunpack.c.l.b16 %v874
      %v951 = vunpack.c.h.b16 %v871
      %v952 = vunpack.c.h.b16 %v872
      %v953 = vunpack.c.h.b16 %v873
      %v954 = vunpack.c.h.b16 %v874
      %v955 = vunpack.c.l.b16 %v875
      %v956 = vunpack.c.l.b16 %v876
      %v957 = vunpack.c.l.b16 %v877
      %v958 = vunpack.c.l.b16 %v878
      %v959 = vunpack.c.h.b16 %v875
      %v960 = vunpack.c.h.b16 %v876
      %v961 = vunpack.c.h.b16 %v877
      %v962 = vunpack.c.h.b16 %v878
      %v963 = vunpack.c.l.b16 %v879
      %v964 = vunpack.c.l.b16 %v880
      %v965 = vunpack.c.l.b16 %v881
      %v966 = vunpack.c.l.b16 %v882
      %v967 = vunpack.c.h.b16 %v879
      %v968 = vunpack.c.h.b16 %v880
      %v969 = vunpack.c.h.b16 %v881
      %v970 = vunpack.c.h.b16 %v882
      %v971 = vunpack.c.l.b16 %v883
      %v972 = vunpack.c.l.b16 %v884
      %v973 = vunpack.c.l.b16 %v885
      %v974 = vunpack.c.l.b16 %v886
      %v975 = vunpack.c.h.b16 %v883
      %v976 = vunpack.c.h.b16 %v884
      %v977 = vunpack.c.h.b16 %v885
      %v978 = vunpack.c.h.b16 %v886
      %v979 = vunpack.c.l.b16 %v887
      %v980 = vunpack.c.l.b16 %v888
      %v981 = vunpack.c.l.b16 %v889
      %v982 = vunpack.c.l.b16 %v890
      %v983 = vunpack.c.h.b16 %v887
      %v984 = vunpack.c.h.b16 %v888
      %v985 = vunpack.c.h.b16 %v889
      %v986 = vunpack.c.h.b16 %v890
      %v987 = vpack.c.b16 %v924, %v923
      %v988 = vpack.c.b16 %v926, %v925
      %v989 = vpack.c.b16 %v928, %v927
      %v990 = vpack.c.b16 %v930, %v929
      %v991 = vpack.c.b16 %v932, %v931
      %v992 = vpack.c.b16 %v934, %v933
      %v993 = vpack.c.b16 %v936, %v935
      %v994 = vpack.c.b16 %v938, %v937
      %v995 = vpack.c.b16 %v940, %v939
      %v996 = vpack.c.b16 %v942, %v941
      %v997 = vpack.c.b16 %v944, %v943
      %v998 = vpack.c.b16 %v946, %v945
      %v999 = vpack.c.b16 %v948, %v947
      %v1000 = vpack.c.b16 %v950, %v949
      %v1001 = vpack.c.b16 %v952, %v951
      %v1002 = vpack.c.b16 %v954, %v953
      %v1003 = vpack.c.b16 %v956, %v955
      %v1004 = vpack.c.b16 %v958, %v957
      %v1005 = vpack.c.b16 %v960, %v959
      %v1006 = vpack.c.b16 %v962, %v961
      %v1007 = vpack.c.b16 %v964, %v963
      %v1008 = vpack.c.b16 %v966, %v965
      %v1009 = vpack.c.b16 %v968, %v967
      %v1010 = vpack.c.b16 %v970, %v969
      %v1011 = vpack.c.b16 %v972, %v971
      %v1012 = vpack.c.b16 %v974, %v973
      %v1013 = vpack.c.b16 %v976, %v975
      %v1014 = vpack.c.b16 %v978, %v977
      %v1015 = vpack.c.b16 %v980, %v979
      %v1016 = vpack.c.b16 %v982, %v981
      %v1017 = vpack.c.b16 %v984, %v983
      %v1018 = vpack.c.b16 %v986, %v985
      %1051 = vst [vmem:[#allocation9] sm:$0xff] %v987
      %1052 = vst [vmem:[#allocation9 + $0x8] sm:$0xff] %v988
      %1053 = vst [vmem:[#allocation9 + $0x10] sm:$0xff] %v989
      %1054 = vst [vmem:[#allocation9 + $0x18] sm:$0xff] %v990
      %1055 = vst [vmem:[#allocation9 + $0x20] sm:$0xff] %v991
      %1056 = vst [vmem:[#allocation9 + $0x28] sm:$0xff] %v992
      %1057 = vst [vmem:[#allocation9 + $0x30] sm:$0xff] %v993
      %1058 = vst [vmem:[#allocation9 + $0x38] sm:$0xff] %v994
      %1059 = vst [vmem:[#allocation9 + $0x40] sm:$0xff] %v995
      %1060 = vst [vmem:[#allocation9 + $0x48] sm:$0xff] %v996
      %1061 = vst [vmem:[#allocation9 + $0x50] sm:$0xff] %v997
      %1062 = vst [vmem:[#allocation9 + $0x58] sm:$0xff] %v998
      %1063 = vst [vmem:[#allocation9 + $0x60] sm:$0xff] %v999
      %1064 = vst [vmem:[#allocation9 + $0x68] sm:$0xff] %v1000
      %1065 = vst [vmem:[#allocation9 + $0x70] sm:$0xff] %v1001
      %1066 = vst [vmem:[#allocation9 + $0x78] sm:$0xff] %v1002
      %1067 = vst [vmem:[#allocation9 + $0x80] sm:$0xff] %v1003
      %1068 = vst [vmem:[#allocation9 + $0x88] sm:$0xff] %v1004
      %1069 = vst [vmem:[#allocation9 + $0x90] sm:$0xff] %v1005
      %1070 = vst [vmem:[#allocation9 + $0x98] sm:$0xff] %v1006
      %1071 = vst [vmem:[#allocation9 + $0xa0] sm:$0xff] %v1007
      %1072 = vst [vmem:[#allocation9 + $0xa8] sm:$0xff] %v1008
      %1073 = vst [vmem:[#allocation9 + $0xb0] sm:$0xff] %v1009
      %1074 = vst [vmem:[#allocation9 + $0xb8] sm:$0xff] %v1010
      %1075 = vst [vmem:[#allocation9 + $0xc0] sm:$0xff] %v1011
      %1076 = vst [vmem:[#allocation9 + $0xc8] sm:$0xff] %v1012
      %1077 = vst [vmem:[#allocation9 + $0xd0] sm:$0xff] %v1013
      %1078 = vst [vmem:[#allocation9 + $0xd8] sm:$0xff] %v1014
      %1079 = vst [vmem:[#allocation9 + $0xe0] sm:$0xff] %v1015
      %1080 = vst [vmem:[#allocation9 + $0xe8] sm:$0xff] %v1016
      %1081 = vst [vmem:[#allocation9 + $0xf0] sm:$0xff] %v1017
      %1082 = vst [vmem:[#allocation9 + $0xf8] sm:$0xff] %v1018
    $region33: #{tpu_custom_call.1} parent=1 // pred_fallthru
      _
    // Predicated region
    $region34: #{tpu_custom_call.1} parent=1 // pred_check
      _
    $region35: #{tpu_custom_call.1} parent=1 // pred_check_branch
      %1084 = sbr.rel (0) target = $region37
    $region36: #{tpu_custom_call.1} parent=1 // pred_region
      %s1086 = ssub.s32 4096, 4096
      %1087 = vsyncadd [#allocation5], %s1086
      %s1088 = sshll.u32 [#allocation9], 4
      %s1089 = int_to_ptr.vmem [resolvable:$true] %s1088
      %1094 = dma.vmem_to_hbm [thread:$0]  %s1089, 4096, %s3, [#allocation5], 256, 256, 16
    $region37: #{tpu_custom_call.1} parent=1 // pred_fallthru
      _
    // Predicated region
    $region38: #{tpu_custom_call.1} parent=1 // pred_check
      _
    $region39: #{tpu_custom_call.1} parent=1 // pred_check_branch
      %1096 = sbr.rel (0) target = $region41
    $region40: #{tpu_custom_call.1} parent=1 // pred_region
      %1097 = dma.done [#allocation5], 4096
    $region41: #{tpu_custom_call.1} parent=1 // pred_fallthru
      _
    %1098 = vsyncpa [#allocation4], 1
    %1099 = vsyncpa [#allocation7], 1
    %1100 = vsyncpa [#allocation5], 1

</llo_original>
